<compile_context>
chip_gen: v6e
topology: v6e:2x2x1
jax: 0.10.0
libtpu: 0.0.40
codegen_flags: <defaults>
</compile_context>

<pallas_src>
import jax
import jax.numpy as jnp
from jax.experimental import pallas as pl
from jax.experimental.pallas import tpu as pltpu


def _round_up(n, m):
    return ((n + m - 1) // m) * m


# ---------------------------------------------------------------------------
# Kernel: one grid step == TS timesteps. Hidden state carried in vregs within a
# grid step (fori_loop carry) and in VMEM scratch across grid steps.
# ---------------------------------------------------------------------------
def _rnn_recurrence_kernel(xproj_ref, h0_ref, w1h_ref, hs_ref, h_scr):
    g = pl.program_id(0)

    @pl.when(g == 0)
    def _():
        h_scr[...] = h0_ref[...]

    w1h = w1h_ref[...]            # (NHp, NHp) bf16, DMA'd once, VMEM-resident
    ts = hs_ref.shape[0]          # static timestep block size

    def step(i, h):
        # xproj_t already contains x_t @ W1x + b1 -> one bf16 MXU push + tanh per step.
        pre = jnp.dot(h.astype(jnp.bfloat16), w1h,
                      preferred_element_type=jnp.float32) + xproj_ref[i]
        h_new = jnp.tanh(pre)
        hs_ref[i] = h_new
        return h_new

    h_last = jax.lax.fori_loop(0, ts, step, h_scr[...], unroll=True)
    h_scr[...] = h_last


# ---------------------------------------------------------------------------
# Wrapper: hoist x/out projections into big GEMMs, pad to (8,128)-aligned
# lane-dense shapes, run the fused-recurrence kernel, unpad.
# ---------------------------------------------------------------------------
@jax.jit
def recurrent_nn_sequence(xs, h0, w1, b1, w2, b2):
    """Run the RNN cell over a full sequence.

    xs: (T, B, obs_dim)                 h0: (B, nhidden)
    w1: (obs_dim + nhidden, nhidden)    b1: (nhidden,)
    w2: (nhidden, latent_dim*2)         b2: (latent_dim*2,)
    Returns (outs: (T, B, latent_dim*2), hs: (T, B, nhidden)).
    """
    T, B, obs_dim = xs.shape
    nhidden = h0.shape[1]
    out_dim = w2.shape[1]
    f32 = jnp.float32

    # (8,128)-aligned padded sizes for the in-kernel arrays.
    Bp = _round_up(max(B, 8), 8)
    NHp = _round_up(nhidden, 128)

    # Timestep block: amortize per-grid-step overhead; cap unroll depth at 32.
    TS = min(T, 32)
    Tp = _round_up(T, TS)
    grid_t = Tp // TS

    # Split W1 so the kernel never concatenates along the lane axis.
    w1x = w1[:obs_dim].astype(f32)       # (obs_dim, nhidden)
    w1h = w1[obs_dim:].astype(f32)       # (nhidden, nhidden)

    # Input projection (+ bias fold) outside the serial loop: one big GEMM with M=T*B.
    xproj = (xs.reshape(T * B, obs_dim).astype(f32) @ w1x
             + b1.astype(f32)).reshape(T, B, nhidden)

    # Zero-pad. Padded batch rows / extra lanes of xproj and h0 are zero, so padded
    # rows of the hidden state stay exactly 0 for all timesteps (inert).
    xproj_p = jnp.zeros((Tp, Bp, NHp), f32).at[:T, :B, :nhidden].set(xproj)
    h0_p = jnp.zeros((Bp, NHp), f32).at[:B, :nhidden].set(h0.astype(f32))
    # bf16 MXU operand; accumulation stays f32 inside the kernel.
    w1h_p = jnp.zeros((NHp, NHp), jnp.bfloat16).at[:nhidden, :nhidden].set(
        w1h.astype(jnp.bfloat16))

    const = lambda g: (0, 0)             # weights / h0: DMA once, stay resident

    grid_spec = pltpu.PrefetchScalarGridSpec(
        num_scalar_prefetch=0,
        grid=(grid_t,),
        in_specs=[
            pl.BlockSpec((TS, Bp, NHp), lambda g: (g, 0, 0)),   # streamed xproj block
            pl.BlockSpec((Bp, NHp), const),                     # h0
            pl.BlockSpec((NHp, NHp), const),                    # W1h (bf16)
        ],
        out_specs=pl.BlockSpec((TS, Bp, NHp), lambda g: (g, 0, 0)),  # lane-dense hs slab
        scratch_shapes=[pltpu.VMEM((Bp, NHp), jnp.float32)],    # cross-block hidden carry
    )

    hs_p = pl.pallas_call(
        _rnn_recurrence_kernel,
        out_shape=jax.ShapeDtypeStruct((Tp, Bp, NHp), jnp.float32),
        grid_spec=grid_spec,
        compiler_params=pltpu.CompilerParams(
            # Time axis carries the hidden state -> must stay sequential.
            # TODO(synk): with multiple independent sequences, add a leading "parallel"
            # grid axis (and batch them into one call) so v7x's second TensorCore is fed.
            dimension_semantics=("arbitrary",),
            vmem_limit_bytes=32 * 1024 * 1024,
        ),
    )(xproj_p, h0_p, w1h_p)

    hs = hs_p[:T, :B, :nhidden]

    # Output projection hoisted out of the recurrence: one big GEMM over (T*B, nhidden).
    outs = (hs.reshape(T * B, nhidden) @ w2.astype(f32)
            + b2.astype(f32)).reshape(T, B, out_dim)
    return outs, hs


def recurrent_nn_forward(x, h, w1, b1, w2, b2):
    """Single-step API matching RecurrentNN.forward(x, h) -> (out, h_new)."""
    outs, hs = recurrent_nn_sequence(x[None], h, w1, b1, w2, b2)
    return outs[0], hs[0]


# ---------------------------------------------------------------------------
# Params / reference
# ---------------------------------------------------------------------------
def init_params(key, obs_dim, latent_dim, nhidden):
    """nn.Linear-style init U(-1/sqrt(fan_in), 1/sqrt(fan_in)); weights stored
    pre-transposed as (in_features, out_features)."""
    k1, k2, k3, k4 = jax.random.split(key, 4)
    in1 = obs_dim + nhidden
    bound1 = 1.0 / jnp.sqrt(in1)
    w1 = jax.random.uniform(k1, (in1, nhidden), jnp.float32, -bound1, bound1)
    b1 = jax.random.uniform(k2, (nhidden,), jnp.float32, -bound1, bound1)

    out2 = latent_dim * 2
    bound2 = 1.0 / jnp.sqrt(nhidden)
    w2 = jax.random.uniform(k3, (nhidden, out2), jnp.float32, -bound2, bound2)
    b2 = jax.random.uniform(k4, (out2,), jnp.float32, -bound2, bound2)
    return w1, b1, w2, b2


def reference_step(x, h, w1, b1, w2, b2):
    combined = jnp.concatenate([x, h], axis=1)
    h_new = jnp.tanh(combined @ w1 + b1)
    out = h_new @ w2 + b2
    return out, h_new


def reference_sequence(xs, h0, w1, b1, w2, b2):
    def step(h, x):
        out, h_new = reference_step(x, h, w1, b1, w2, b2)
        return h_new, (out, h_new)
    _, (outs, hs) = jax.lax.scan(step, h0, xs)
    return outs, hs


if __name__ == "__main__":
    # Small shapes consistent with the module's forward.
    seq_len, nbatch, obs_dim, nhidden, latent_dim = 8, 2, 4, 32, 8

    key = jax.random.PRNGKey(0)
    kx, kp = jax.random.split(key)

    xs = jax.random.normal(kx, (seq_len, nbatch, obs_dim), jnp.float32)
    h0 = jnp.zeros((nbatch, nhidden), jnp.float32)      # init_hidden()
    w1, b1, w2, b2 = init_params(kp, obs_dim, latent_dim, nhidden)

    # Fused-sequence kernel (whole recurrence in one pallas_call).
    outs, hs = recurrent_nn_sequence(xs, h0, w1, b1, w2, b2)
    outs = jax.block_until_ready(outs)
    hs = jax.block_until_ready(hs)

    ref_outs, ref_hs = reference_sequence(xs, h0, w1, b1, w2, b2)
    assert outs.shape == (seq_len, nbatch, latent_dim * 2)
    assert hs.shape == (seq_len, nbatch, nhidden)
    # Tolerance reflects bf16 MXU operands (f32 accumulation) in the recurrent matmul.
    assert jnp.allclose(outs, ref_outs, atol=2e-2, rtol=2e-2)
    assert jnp.allclose(hs, ref_hs, atol=2e-2, rtol=2e-2)

    # Single-step API (exact module signature: forward(x, h) -> (out, h_new)).
    out1, h1 = recurrent_nn_forward(xs[0], h0, w1, b1, w2, b2)
    out1 = jax.block_until_ready(out1)
    ref_out1, ref_h1 = reference_step(xs[0], h0, w1, b1, w2, b2)
    assert jnp.allclose(out1, ref_out1, atol=2e-2, rtol=2e-2)
    assert jnp.allclose(h1, ref_h1, atol=2e-2, rtol=2e-2)

    print("KERNEL_OK")
</pallas_src>

<mosaic_0001>
module attributes {stable_mosaic.version = 11 : i64} {
  func.func @_rnn_recurrence_kernel(%arg0: i32, %arg1: memref<8x8x128xf32, #tpu.memory_space<vmem>>, %arg2: memref<8x128xf32, #tpu.memory_space<vmem>>, %arg3: memref<128x128xbf16, #tpu.memory_space<vmem>>, %arg4: memref<8x8x128xf32, #tpu.memory_space<vmem>>, %arg5: memref<8x128xf32, #tpu.memory_space<vmem>>) attributes {dimension_semantics = [#tpu.dimension_semantics<arbitrary>], iteration_bounds = array<i64: 1>, scalar_prefetch = 0 : i64, scratch_operands = 1 : i64, tpu.core_type = #tpu.core_type<tc>, window_params = [{transform_indices = @transform_0, window_bounds = array<i64: 8, 8, 128>}, {pipeline_mode = #tpu.pipeline_mode<synchronous>, transform_indices = @transform_1, window_bounds = array<i64: 8, 128>}, {pipeline_mode = #tpu.pipeline_mode<synchronous>, transform_indices = @transform_2, window_bounds = array<i64: 128, 128>}, {transform_indices = @transform_3, window_bounds = array<i64: 8, 8, 128>}]} {
    %c0_i32 = arith.constant 0 : i32
    %0 = arith.cmpi eq, %arg0, %c0_i32 : i32
    %1 = arith.extui %0 : i1 to i32
    %c0_i32_0 = arith.constant 0 : i32
    %2 = arith.cmpi ne, %1, %c0_i32_0 : i32
    scf.if %2 {
      %c0_46 = arith.constant 0 : index
      %c0_47 = arith.constant 0 : index
      %94 = vector.load %arg2[%c0_46, %c0_47] : memref<8x128xf32, #tpu.memory_space<vmem>>, vector<8x128xf32>
      %c0_48 = arith.constant 0 : index
      %c0_49 = arith.constant 0 : index
      %95 = vector.load %arg5[%c0_48, %c0_49] : memref<8x128xf32, #tpu.memory_space<vmem>>, vector<8x128xf32>
      tpu.vector_store %arg5[%c0_48, %c0_49], %94 {strides = array<i32>} : memref<8x128xf32, #tpu.memory_space<vmem>>, vector<8x128xf32>,
    } else {
    }
    %c0 = arith.constant 0 : index
    %c0_1 = arith.constant 0 : index
    %3 = vector.load %arg3[%c0, %c0_1] : memref<128x128xbf16, #tpu.memory_space<vmem>>, vector<128x128xbf16>
    %c0_2 = arith.constant 0 : index
    %c0_3 = arith.constant 0 : index
    %4 = vector.load %arg5[%c0_2, %c0_3] : memref<8x128xf32, #tpu.memory_space<vmem>>, vector<8x128xf32>
    %c0_i32_4 = arith.constant 0 : i32
    %5 = arith.truncf %4 : vector<8x128xf32> to vector<8x128xbf16>
    %cst = arith.constant dense<0.000000e+00> : vector<8x128xf32>
    %6 = tpu.matmul %5, %3, %cst {dimension_numbers = #tpu.dot_dimension_numbers<[1], [0], [0], [1], [0, 0, 1, 1], [], []>} : vector<8x128xbf16>, vector<128x128xbf16>, vector<8x128xf32> -> vector<8x128xf32>
    %7 = arith.index_cast %c0_i32_4 : i32 to index
    %c0_5 = arith.constant 0 : index
    %c0_6 = arith.constant 0 : index
    %8 = vector.load %arg1[%7, %c0_5, %c0_6] : memref<8x8x128xf32, #tpu.memory_space<vmem>>, vector<1x8x128xf32>
    %9 = vector.shape_cast %8 : vector<1x8x128xf32> to vector<8x128xf32>
    %10 = arith.addf %6, %9 : vector<8x128xf32>
    %11 = math.tanh %10 : vector<8x128xf32>
    %12 = arith.index_cast %c0_i32_4 : i32 to index
    %c0_7 = arith.constant 0 : index
    %c0_8 = arith.constant 0 : index
    %13 = vector.load %arg4[%12, %c0_7, %c0_8] : memref<8x8x128xf32, #tpu.memory_space<vmem>>, vector<1x8x128xf32>
    %14 = vector.shape_cast %13 : vector<1x8x128xf32> to vector<8x128xf32>
    %15 = vector.shape_cast %11 : vector<8x128xf32> to vector<1x8x128xf32>
    tpu.vector_store %arg4[%12, %c0_7, %c0_8], %15 {strides = array<i32>} : memref<8x8x128xf32, #tpu.memory_space<vmem>>, vector<1x8x128xf32>,
    %c1_i32 = arith.constant 1 : i32
    %16 = arith.truncf %11 : vector<8x128xf32> to vector<8x128xbf16>
    %cst_9 = arith.constant dense<0.000000e+00> : vector<8x128xf32>
    %17 = tpu.matmul %16, %3, %cst_9 {dimension_numbers = #tpu.dot_dimension_numbers<[1], [0], [0], [1], [0, 0, 1, 1], [], []>} : vector<8x128xbf16>, vector<128x128xbf16>, vector<8x128xf32> -> vector<8x128xf32>
    %18 = arith.index_cast %c1_i32 : i32 to index
    %c0_10 = arith.constant 0 : index
    %c0_11 = arith.constant 0 : index
    %19 = vector.load %arg1[%18, %c0_10, %c0_11] : memref<8x8x128xf32, #tpu.memory_space<vmem>>, vector<1x8x128xf32>
    %20 = vector.shape_cast %19 : vector<1x8x128xf32> to vector<8x128xf32>
    %21 = arith.addf %17, %20 : vector<8x128xf32>
    %22 = math.tanh %21 : vector<8x128xf32>
    %23 = arith.index_cast %c1_i32 : i32 to index
    %c0_12 = arith.constant 0 : index
    %c0_13 = arith.constant 0 : index
    %24 = vector.load %arg4[%23, %c0_12, %c0_13] : memref<8x8x128xf32, #tpu.memory_space<vmem>>, vector<1x8x128xf32>
    %25 = vector.shape_cast %24 : vector<1x8x128xf32> to vector<8x128xf32>
    %26 = vector.shape_cast %22 : vector<8x128xf32> to vector<1x8x128xf32>
    tpu.vector_store %arg4[%23, %c0_12, %c0_13], %26 {strides = array<i32>} : memref<8x8x128xf32, #tpu.memory_space<vmem>>, vector<1x8x128xf32>,
    %c2_i32 = arith.constant 2 : i32
    %27 = arith.truncf %22 : vector<8x128xf32> to vector<8x128xbf16>
    %cst_14 = arith.constant dense<0.000000e+00> : vector<8x128xf32>
    %28 = tpu.matmul %27, %3, %cst_14 {dimension_numbers = #tpu.dot_dimension_numbers<[1], [0], [0], [1], [0, 0, 1, 1], [], []>} : vector<8x128xbf16>, vector<128x128xbf16>, vector<8x128xf32> -> vector<8x128xf32>
    %29 = arith.index_cast %c2_i32 : i32 to index
    %c0_15 = arith.constant 0 : index
    %c0_16 = arith.constant 0 : index
    %30 = vector.load %arg1[%29, %c0_15, %c0_16] : memref<8x8x128xf32, #tpu.memory_space<vmem>>, vector<1x8x128xf32>
    %31 = vector.shape_cast %30 : vector<1x8x128xf32> to vector<8x128xf32>
    %32 = arith.addf %28, %31 : vector<8x128xf32>
    %33 = math.tanh %32 : vector<8x128xf32>
    %34 = arith.index_cast %c2_i32 : i32 to index
    %c0_17 = arith.constant 0 : index
    %c0_18 = arith.constant 0 : index
    %35 = vector.load %arg4[%34, %c0_17, %c0_18] : memref<8x8x128xf32, #tpu.memory_space<vmem>>, vector<1x8x128xf32>
    %36 = vector.shape_cast %35 : vector<1x8x128xf32> to vector<8x128xf32>
    %37 = vector.shape_cast %33 : vector<8x128xf32> to vector<1x8x128xf32>
    tpu.vector_store %arg4[%34, %c0_17, %c0_18], %37 {strides = array<i32>} : memref<8x8x128xf32, #tpu.memory_space<vmem>>, vector<1x8x128xf32>,
    %c3_i32 = arith.constant 3 : i32
    %38 = arith.truncf %33 : vector<8x128xf32> to vector<8x128xbf16>
    %cst_19 = arith.constant dense<0.000000e+00> : vector<8x128xf32>
    %39 = tpu.matmul %38, %3, %cst_19 {dimension_numbers = #tpu.dot_dimension_numbers<[1], [0], [0], [1], [0, 0, 1, 1], [], []>} : vector<8x128xbf16>, vector<128x128xbf16>, vector<8x128xf32> -> vector<8x128xf32>
    %40 = arith.index_cast %c3_i32 : i32 to index
    %c0_20 = arith.constant 0 : index
    %c0_21 = arith.constant 0 : index
    %41 = vector.load %arg1[%40, %c0_20, %c0_21] : memref<8x8x128xf32, #tpu.memory_space<vmem>>, vector<1x8x128xf32>
    %42 = vector.shape_cast %41 : vector<1x8x128xf32> to vector<8x128xf32>
    %43 = arith.addf %39, %42 : vector<8x128xf32>
    %44 = math.tanh %43 : vector<8x128xf32>
    %45 = arith.index_cast %c3_i32 : i32 to index
    %c0_22 = arith.constant 0 : index
    %c0_23 = arith.constant 0 : index
    %46 = vector.load %arg4[%45, %c0_22, %c0_23] : memref<8x8x128xf32, #tpu.memory_space<vmem>>, vector<1x8x128xf32>
    %47 = vector.shape_cast %46 : vector<1x8x128xf32> to vector<8x128xf32>
    %48 = vector.shape_cast %44 : vector<8x128xf32> to vector<1x8x128xf32>
    tpu.vector_store %arg4[%45, %c0_22, %c0_23], %48 {strides = array<i32>} : memref<8x8x128xf32, #tpu.memory_space<vmem>>, vector<1x8x128xf32>,
    %c4_i32 = arith.constant 4 : i32
    %49 = arith.truncf %44 : vector<8x128xf32> to vector<8x128xbf16>
    %cst_24 = arith.constant dense<0.000000e+00> : vector<8x128xf32>
    %50 = tpu.matmul %49, %3, %cst_24 {dimension_numbers = #tpu.dot_dimension_numbers<[1], [0], [0], [1], [0, 0, 1, 1], [], []>} : vector<8x128xbf16>, vector<128x128xbf16>, vector<8x128xf32> -> vector<8x128xf32>
    %51 = arith.index_cast %c4_i32 : i32 to index
    %c0_25 = arith.constant 0 : index
    %c0_26 = arith.constant 0 : index
    %52 = vector.load %arg1[%51, %c0_25, %c0_26] : memref<8x8x128xf32, #tpu.memory_space<vmem>>, vector<1x8x128xf32>
    %53 = vector.shape_cast %52 : vector<1x8x128xf32> to vector<8x128xf32>
    %54 = arith.addf %50, %53 : vector<8x128xf32>
    %55 = math.tanh %54 : vector<8x128xf32>
    %56 = arith.index_cast %c4_i32 : i32 to index
    %c0_27 = arith.constant 0 : index
    %c0_28 = arith.constant 0 : index
    %57 = vector.load %arg4[%56, %c0_27, %c0_28] : memref<8x8x128xf32, #tpu.memory_space<vmem>>, vector<1x8x128xf32>
    %58 = vector.shape_cast %57 : vector<1x8x128xf32> to vector<8x128xf32>
    %59 = vector.shape_cast %55 : vector<8x128xf32> to vector<1x8x128xf32>
    tpu.vector_store %arg4[%56, %c0_27, %c0_28], %59 {strides = array<i32>} : memref<8x8x128xf32, #tpu.memory_space<vmem>>, vector<1x8x128xf32>,
    %c5_i32 = arith.constant 5 : i32
    %60 = arith.truncf %55 : vector<8x128xf32> to vector<8x128xbf16>
    %cst_29 = arith.constant dense<0.000000e+00> : vector<8x128xf32>
    %61 = tpu.matmul %60, %3, %cst_29 {dimension_numbers = #tpu.dot_dimension_numbers<[1], [0], [0], [1], [0, 0, 1, 1], [], []>} : vector<8x128xbf16>, vector<128x128xbf16>, vector<8x128xf32> -> vector<8x128xf32>
    %62 = arith.index_cast %c5_i32 : i32 to index
    %c0_30 = arith.constant 0 : index
    %c0_31 = arith.constant 0 : index
    %63 = vector.load %arg1[%62, %c0_30, %c0_31] : memref<8x8x128xf32, #tpu.memory_space<vmem>>, vector<1x8x128xf32>
    %64 = vector.shape_cast %63 : vector<1x8x128xf32> to vector<8x128xf32>
    %65 = arith.addf %61, %64 : vector<8x128xf32>
    %66 = math.tanh %65 : vector<8x128xf32>
    %67 = arith.index_cast %c5_i32 : i32 to index
    %c0_32 = arith.constant 0 : index
    %c0_33 = arith.constant 0 : index
    %68 = vector.load %arg4[%67, %c0_32, %c0_33] : memref<8x8x128xf32, #tpu.memory_space<vmem>>, vector<1x8x128xf32>
    %69 = vector.shape_cast %68 : vector<1x8x128xf32> to vector<8x128xf32>
    %70 = vector.shape_cast %66 : vector<8x128xf32> to vector<1x8x128xf32>
    tpu.vector_store %arg4[%67, %c0_32, %c0_33], %70 {strides = array<i32>} : memref<8x8x128xf32, #tpu.memory_space<vmem>>, vector<1x8x128xf32>,
    %c6_i32 = arith.constant 6 : i32
    %71 = arith.truncf %66 : vector<8x128xf32> to vector<8x128xbf16>
    %cst_34 = arith.constant dense<0.000000e+00> : vector<8x128xf32>
    %72 = tpu.matmul %71, %3, %cst_34 {dimension_numbers = #tpu.dot_dimension_numbers<[1], [0], [0], [1], [0, 0, 1, 1], [], []>} : vector<8x128xbf16>, vector<128x128xbf16>, vector<8x128xf32> -> vector<8x128xf32>
    %73 = arith.index_cast %c6_i32 : i32 to index
    %c0_35 = arith.constant 0 : index
    %c0_36 = arith.constant 0 : index
    %74 = vector.load %arg1[%73, %c0_35, %c0_36] : memref<8x8x128xf32, #tpu.memory_space<vmem>>, vector<1x8x128xf32>
    %75 = vector.shape_cast %74 : vector<1x8x128xf32> to vector<8x128xf32>
    %76 = arith.addf %72, %75 : vector<8x128xf32>
    %77 = math.tanh %76 : vector<8x128xf32>
    %78 = arith.index_cast %c6_i32 : i32 to index
    %c0_37 = arith.constant 0 : index
    %c0_38 = arith.constant 0 : index
    %79 = vector.load %arg4[%78, %c0_37, %c0_38] : memref<8x8x128xf32, #tpu.memory_space<vmem>>, vector<1x8x128xf32>
    %80 = vector.shape_cast %79 : vector<1x8x128xf32> to vector<8x128xf32>
    %81 = vector.shape_cast %77 : vector<8x128xf32> to vector<1x8x128xf32>
    tpu.vector_store %arg4[%78, %c0_37, %c0_38], %81 {strides = array<i32>} : memref<8x8x128xf32, #tpu.memory_space<vmem>>, vector<1x8x128xf32>,
    %c7_i32 = arith.constant 7 : i32
    %82 = arith.truncf %77 : vector<8x128xf32> to vector<8x128xbf16>
    %cst_39 = arith.constant dense<0.000000e+00> : vector<8x128xf32>
    %83 = tpu.matmul %82, %3, %cst_39 {dimension_numbers = #tpu.dot_dimension_numbers<[1], [0], [0], [1], [0, 0, 1, 1], [], []>} : vector<8x128xbf16>, vector<128x128xbf16>, vector<8x128xf32> -> vector<8x128xf32>
    %84 = arith.index_cast %c7_i32 : i32 to index
    %c0_40 = arith.constant 0 : index
    %c0_41 = arith.constant 0 : index
    %85 = vector.load %arg1[%84, %c0_40, %c0_41] : memref<8x8x128xf32, #tpu.memory_space<vmem>>, vector<1x8x128xf32>
    %86 = vector.shape_cast %85 : vector<1x8x128xf32> to vector<8x128xf32>
    %87 = arith.addf %83, %86 : vector<8x128xf32>
    %88 = math.tanh %87 : vector<8x128xf32>
    %89 = arith.index_cast %c7_i32 : i32 to index
    %c0_42 = arith.constant 0 : index
    %c0_43 = arith.constant 0 : index
    %90 = vector.load %arg4[%89, %c0_42, %c0_43] : memref<8x8x128xf32, #tpu.memory_space<vmem>>, vector<1x8x128xf32>
    %91 = vector.shape_cast %90 : vector<1x8x128xf32> to vector<8x128xf32>
    %92 = vector.shape_cast %88 : vector<8x128xf32> to vector<1x8x128xf32>
    tpu.vector_store %arg4[%89, %c0_42, %c0_43], %92 {strides = array<i32>} : memref<8x8x128xf32, #tpu.memory_space<vmem>>, vector<1x8x128xf32>,
    %c8_i32 = arith.constant 8 : i32
    %c0_44 = arith.constant 0 : index
    %c0_45 = arith.constant 0 : index
    %93 = vector.load %arg5[%c0_44, %c0_45] : memref<8x128xf32, #tpu.memory_space<vmem>>, vector<8x128xf32>
    tpu.vector_store %arg5[%c0_44, %c0_45], %88 {strides = array<i32>} : memref<8x128xf32, #tpu.memory_space<vmem>>, vector<8x128xf32>,
    return
  }
  func.func @transform_0(%arg0: i32) -> (i32, i32, i32) {
    %c0_i32 = arith.constant 0 : i32
    %c0_i32_0 = arith.constant 0 : i32
    %c0_i32_1 = arith.constant 0 : i32
    return %arg0, %c0_i32, %c0_i32_0 : i32, i32, i32
  }
  func.func @transform_1(%arg0: i32) -> (i32, i32) {
    %c0_i32 = arith.constant 0 : i32
    %c0_i32_0 = arith.constant 0 : i32
    %c0_i32_1 = arith.constant 0 : i32
    return %c0_i32, %c0_i32_0 : i32, i32
  }
  func.func @transform_2(%arg0: i32) -> (i32, i32) {
    %c0_i32 = arith.constant 0 : i32
    %c0_i32_0 = arith.constant 0 : i32
    %c0_i32_1 = arith.constant 0 : i32
    return %c0_i32, %c0_i32_0 : i32, i32
  }
  func.func @transform_3(%arg0: i32) -> (i32, i32, i32) {
    %c0_i32 = arith.constant 0 : i32
    %c0_i32_0 = arith.constant 0 : i32
    %c0_i32_1 = arith.constant 0 : i32
    return %arg0, %c0_i32, %c0_i32_0 : i32, i32, i32
  }
}

</mosaic_0001>

<llo_original>
// kernel: recurrent_nn_sequence.1
$region0: #{recurrent_nn_sequence.1}
  #allocation0 [shape = 'u32[]', space=smem, size = 0x4, offset = 0x4, fixed_abs, tag = 'smem constant byte address 0x4 - core index']
  #allocation1 [shape = 'u32[144,128]{1,0:T(1,128)}', space=vmem, size = 0x12000, scoped, tag = 'internal scratch']
  #allocation2 [shape = 'f32[8,128]{1,0:T(8,128)}', space=vmem, size = 0x1000, scoped, tag = 'scratch operand']
  %s0 = inlined_call_operand.vmem [shape: f32[8,8,128], index: 0, kind: input, shape index: {}]
  %s1 = inlined_call_operand.vmem [shape: f32[8,128], index: 1, kind: input, shape index: {}]
  %s2 = inlined_call_operand.vmem [shape: bf16[128,128], index: 2, kind: input, shape index: {}]
  %s3 = inlined_call_operand.vmem [shape: f32[8,8,128], index: 3, kind: output, shape index: {}]
  %s4 = sld [smem:[#allocation0]]
  $region26: #{recurrent_nn_sequence.1} parent=0
    _
  %s6 = ssub.s32 1, %s4
  %s7 = scalar_select 0, %s6, %s4
  // Predicated region
  $region2: #{recurrent_nn_sequence.1} parent=0 // pred_check
    _
  $region3: #{recurrent_nn_sequence.1} parent=0 // pred_check_branch
    %9 = sbr.rel (0) target = $region5
  $region4: #{recurrent_nn_sequence.1} parent=0 // pred_region
    _
  $region5: #{recurrent_nn_sequence.1} parent=0 // pred_fallthru
    _
  // Predicated region
  $region6: #{recurrent_nn_sequence.1} parent=0 // pred_check
    _
  $region7: #{recurrent_nn_sequence.1} parent=0 // pred_check_branch
    %11 = sbr.rel (0) target = $region9
  $region8: #{recurrent_nn_sequence.1} parent=0 // pred_region
    _
  $region9: #{recurrent_nn_sequence.1} parent=0 // pred_fallthru
    _
  // Predicated region
  $region10: #{recurrent_nn_sequence.1} parent=0 // pred_check
    _
  $region11: #{recurrent_nn_sequence.1} parent=0 // pred_check_branch
    %13 = sbr.rel (0) target = $region13
  $region12: #{recurrent_nn_sequence.1} parent=0 // pred_region
    _
  $region13: #{recurrent_nn_sequence.1} parent=0 // pred_fallthru
    _
  %p15 = scmp.eq.s32.totalorder 0, 0
  // Predicated region
  $region14: #{recurrent_nn_sequence.1} parent=0 // pred_check
    %p16 = pneg %p15
  $region15: #{recurrent_nn_sequence.1} parent=0 // pred_check_branch
    %18 = sbr.rel (%p16) target = $region17
  $region16: #{recurrent_nn_sequence.1} parent=0 // pred_region
    %v19 = vld [vmem:[%s1] sm:$0xff]
    %20 = vst [vmem:[#allocation2] sm:$0xff] %v19
  $region17: #{recurrent_nn_sequence.1} parent=0 // pred_fallthru
    _
  %v21 = vld [vmem:[%s2] sm:$0xf]
  %v22 = vld [vmem:[%s2 + $0x4] sm:$0xf]
  %v23 = vld [vmem:[%s2 + $0x8] sm:$0xf]
  %v24 = vld [vmem:[%s2 + $0xc] sm:$0xf]
  %v25 = vld [vmem:[%s2 + $0x10] sm:$0xf]
  %v26 = vld [vmem:[%s2 + $0x14] sm:$0xf]
  %v27 = vld [vmem:[%s2 + $0x18] sm:$0xf]
  %v28 = vld [vmem:[%s2 + $0x1c] sm:$0xf]
  %v29 = vld [vmem:[%s2 + $0x20] sm:$0xf]
  %v30 = vld [vmem:[%s2 + $0x24] sm:$0xf]
  %v31 = vld [vmem:[%s2 + $0x28] sm:$0xf]
  %v32 = vld [vmem:[%s2 + $0x2c] sm:$0xf]
  %v33 = vld [vmem:[%s2 + $0x30] sm:$0xf]
  %v34 = vld [vmem:[%s2 + $0x34] sm:$0xf]
  %v35 = vld [vmem:[%s2 + $0x38] sm:$0xf]
  %v36 = vld [vmem:[%s2 + $0x3c] sm:$0xf]
  %v37 = vld [vmem:[#allocation2] sm:$0xff]
  %v38 = vpack.c.bf16 %v37, %v37
  %v39 = vld [vmem:[%s0] sm:$0xff]
  %v56 = vunpack.c.l.b16 %v21
  %v57 = vunpack.c.l.b16 %v22
  %v58 = vunpack.c.l.b16 %v23
  %v59 = vunpack.c.l.b16 %v24
  %v60 = vunpack.c.l.b16 %v25
  %v61 = vunpack.c.l.b16 %v26
  %v62 = vunpack.c.l.b16 %v27
  %v63 = vunpack.c.l.b16 %v28
  %v64 = vunpack.c.l.b16 %v29
  %v65 = vunpack.c.l.b16 %v30
  %v66 = vunpack.c.l.b16 %v31
  %v67 = vunpack.c.l.b16 %v32
  %v68 = vunpack.c.l.b16 %v33
  %v69 = vunpack.c.l.b16 %v34
  %v70 = vunpack.c.l.b16 %v35
  %v71 = vunpack.c.l.b16 %v36
  %v72 = vpack.c.b16 %v57, %v56
  %v73 = vpack.c.b16 %v59, %v58
  %v74 = vpack.c.b16 %v61, %v60
  %v75 = vpack.c.b16 %v63, %v62
  %v76 = vpack.c.b16 %v65, %v64
  %v77 = vpack.c.b16 %v67, %v66
  %v78 = vpack.c.b16 %v69, %v68
  %v79 = vpack.c.b16 %v71, %v70
  %88 = vmatprep.subr.bf16.mxu0 0
  %89 = vmatpush1.bf16.msra.mxu0 %v79
  %90 = vmatprep.subr.bf16.mxu0 0
  %91 = vmatpush1.bf16.msra.mxu0 %v78
  %92 = vmatprep.subr.bf16.mxu0 0
  %93 = vmatpush1.bf16.msra.mxu0 %v77
  %94 = vmatprep.subr.bf16.mxu0 0
  %95 = vmatpush1.bf16.msra.mxu0 %v76
  %96 = vmatprep.subr.bf16.mxu0 0
  %97 = vmatpush1.bf16.msra.mxu0 %v75
  %98 = vmatprep.subr.bf16.mxu0 0
  %99 = vmatpush1.bf16.msra.mxu0 %v74
  %100 = vmatprep.subr.bf16.mxu0 0
  %101 = vmatpush1.bf16.msra.mxu0 %v73
  %102 = vmatprep.subr.bf16.mxu0 0
  %103 = vmatpush1.bf16.msra.mxu0 %v72
  %104 = vmatprep.subr.bf16.mxu0 0
  %105 = vmatpush2.bf16.msra.mxu0 0
  %106 = vmatprep.subr.bf16.mxu0 0
  %107 = vmatpush2.bf16.msra.mxu0 0
  %108 = vmatprep.subr.bf16.mxu0 0
  %109 = vmatpush2.bf16.msra.mxu0 0
  %110 = vmatprep.subr.bf16.mxu0 0
  %111 = vmatpush2.bf16.msra.mxu0 0
  %112 = vmatprep.subr.bf16.mxu0 0
  %113 = vmatpush2.bf16.msra.mxu0 0
  %114 = vmatprep.subr.bf16.mxu0 0
  %115 = vmatpush2.bf16.msra.mxu0 0
  %116 = vmatprep.subr.bf16.mxu0 0
  %117 = vmatpush2.bf16.msra.mxu0 0
  %118 = vmatprep.subr.bf16.mxu0 0
  %119 = vmatpush2.bf16.msra.mxu0 0
  %120 = vmatprep.mubr.bf16.mxu0 0
  %121 = vmatmul.mubr.bf16.gmra.mxu0 %v38
  %v122 = vpop.f32.mrf.mxu0
  %v123 = vadd.f32 %v39, %v122
  %v124 = vpop.f32.mrf.mxu0
  %v125 = vpop.f32.mrf.mxu0
  %v126 = vpop.f32.mrf.mxu0
  %127 = vdwg.mxu0
  %v128 = vtanh.pop %v123
  %129 = vst [vmem:[%s3] sm:$0xff] %v128
  %v130 = vpack.c.bf16 %v128, %v128
  %s131 = scalar_lea.vmem %s0, 8
  %v132 = vld [vmem:[%s131] sm:$0xff]
  %133 = vmatprep.subr.bf16.mxu0 0
  %134 = vmatpush1.bf16.msra.mxu0 %v79
  %135 = vmatprep.subr.bf16.mxu0 0
  %136 = vmatpush1.bf16.msra.mxu0 %v78
  %137 = vmatprep.subr.bf16.mxu0 0
  %138 = vmatpush1.bf16.msra.mxu0 %v77
  %139 = vmatprep.subr.bf16.mxu0 0
  %140 = vmatpush1.bf16.msra.mxu0 %v76
  %141 = vmatprep.subr.bf16.mxu0 0
  %142 = vmatpush1.bf16.msra.mxu0 %v75
  %143 = vmatprep.subr.bf16.mxu0 0
  %144 = vmatpush1.bf16.msra.mxu0 %v74
  %145 = vmatprep.subr.bf16.mxu0 0
  %146 = vmatpush1.bf16.msra.mxu0 %v73
  %147 = vmatprep.subr.bf16.mxu0 0
  %148 = vmatpush1.bf16.msra.mxu0 %v72
  %149 = vmatprep.subr.bf16.mxu0 0
  %150 = vmatpush2.bf16.msra.mxu0 0
  %151 = vmatprep.subr.bf16.mxu0 0
  %152 = vmatpush2.bf16.msra.mxu0 0
  %153 = vmatprep.subr.bf16.mxu0 0
  %154 = vmatpush2.bf16.msra.mxu0 0
  %155 = vmatprep.subr.bf16.mxu0 0
  %156 = vmatpush2.bf16.msra.mxu0 0
  %157 = vmatprep.subr.bf16.mxu0 0
  %158 = vmatpush2.bf16.msra.mxu0 0
  %159 = vmatprep.subr.bf16.mxu0 0
  %160 = vmatpush2.bf16.msra.mxu0 0
  %161 = vmatprep.subr.bf16.mxu0 0
  %162 = vmatpush2.bf16.msra.mxu0 0
  %163 = vmatprep.subr.bf16.mxu0 0
  %164 = vmatpush2.bf16.msra.mxu0 0
  %165 = vmatprep.mubr.bf16.mxu0 0
  %166 = vmatmul.mubr.bf16.gmra.mxu0 %v130
  %v167 = vpop.f32.mrf.mxu0
  %v168 = vadd.f32 %v132, %v167
  %v169 = vpop.f32.mrf.mxu0
  %v170 = vpop.f32.mrf.mxu0
  %v171 = vpop.f32.mrf.mxu0
  %172 = vdwg.mxu0
  %v173 = vtanh.pop %v168
  %s174 = scalar_lea.vmem %s3, 8
  %175 = vst [vmem:[%s174] sm:$0xff] %v173
  %v176 = vpack.c.bf16 %v173, %v173
  %s177 = scalar_lea.vmem %s0, 16
  %v178 = vld [vmem:[%s177] sm:$0xff]
  %179 = vmatprep.subr.bf16.mxu0 0
  %180 = vmatpush1.bf16.msra.mxu0 %v79
  %181 = vmatprep.subr.bf16.mxu0 0
  %182 = vmatpush1.bf16.msra.mxu0 %v78
  %183 = vmatprep.subr.bf16.mxu0 0
  %184 = vmatpush1.bf16.msra.mxu0 %v77
  %185 = vmatprep.subr.bf16.mxu0 0
  %186 = vmatpush1.bf16.msra.mxu0 %v76
  %187 = vmatprep.subr.bf16.mxu0 0
  %188 = vmatpush1.bf16.msra.mxu0 %v75
  %189 = vmatprep.subr.bf16.mxu0 0
  %190 = vmatpush1.bf16.msra.mxu0 %v74
  %191 = vmatprep.subr.bf16.mxu0 0
  %192 = vmatpush1.bf16.msra.mxu0 %v73
  %193 = vmatprep.subr.bf16.mxu0 0
  %194 = vmatpush1.bf16.msra.mxu0 %v72
  %195 = vmatprep.subr.bf16.mxu0 0
  %196 = vmatpush2.bf16.msra.mxu0 0
  %197 = vmatprep.subr.bf16.mxu0 0
  %198 = vmatpush2.bf16.msra.mxu0 0
  %199 = vmatprep.subr.bf16.mxu0 0
  %200 = vmatpush2.bf16.msra.mxu0 0
  %201 = vmatprep.subr.bf16.mxu0 0
  %202 = vmatpush2.bf16.msra.mxu0 0
  %203 = vmatprep.subr.bf16.mxu0 0
  %204 = vmatpush2.bf16.msra.mxu0 0
  %205 = vmatprep.subr.bf16.mxu0 0
  %206 = vmatpush2.bf16.msra.mxu0 0
  %207 = vmatprep.subr.bf16.mxu0 0
  %208 = vmatpush2.bf16.msra.mxu0 0
  %209 = vmatprep.subr.bf16.mxu0 0
  %210 = vmatpush2.bf16.msra.mxu0 0
  %211 = vmatprep.mubr.bf16.mxu0 0
  %212 = vmatmul.mubr.bf16.gmra.mxu0 %v176
  %v213 = vpop.f32.mrf.mxu0
  %v214 = vadd.f32 %v178, %v213
  %v215 = vpop.f32.mrf.mxu0
  %v216 = vpop.f32.mrf.mxu0
  %v217 = vpop.f32.mrf.mxu0
  %218 = vdwg.mxu0
  %v219 = vtanh.pop %v214
  %s220 = scalar_lea.vmem %s3, 16
  %221 = vst [vmem:[%s220] sm:$0xff] %v219
  %v222 = vpack.c.bf16 %v219, %v219
  %s223 = scalar_lea.vmem %s0, 24
  %v224 = vld [vmem:[%s223] sm:$0xff]
  %225 = vmatprep.subr.bf16.mxu0 0
  %226 = vmatpush1.bf16.msra.mxu0 %v79
  %227 = vmatprep.subr.bf16.mxu0 0
  %228 = vmatpush1.bf16.msra.mxu0 %v78
  %229 = vmatprep.subr.bf16.mxu0 0
  %230 = vmatpush1.bf16.msra.mxu0 %v77
  %231 = vmatprep.subr.bf16.mxu0 0
  %232 = vmatpush1.bf16.msra.mxu0 %v76
  %233 = vmatprep.subr.bf16.mxu0 0
  %234 = vmatpush1.bf16.msra.mxu0 %v75
  %235 = vmatprep.subr.bf16.mxu0 0
  %236 = vmatpush1.bf16.msra.mxu0 %v74
  %237 = vmatprep.subr.bf16.mxu0 0
  %238 = vmatpush1.bf16.msra.mxu0 %v73
  %239 = vmatprep.subr.bf16.mxu0 0
  %240 = vmatpush1.bf16.msra.mxu0 %v72
  %241 = vmatprep.subr.bf16.mxu0 0
  %242 = vmatpush2.bf16.msra.mxu0 0
  %243 = vmatprep.subr.bf16.mxu0 0
  %244 = vmatpush2.bf16.msra.mxu0 0
  %245 = vmatprep.subr.bf16.mxu0 0
  %246 = vmatpush2.bf16.msra.mxu0 0
  %247 = vmatprep.subr.bf16.mxu0 0
  %248 = vmatpush2.bf16.msra.mxu0 0
  %249 = vmatprep.subr.bf16.mxu0 0
  %250 = vmatpush2.bf16.msra.mxu0 0
  %251 = vmatprep.subr.bf16.mxu0 0
  %252 = vmatpush2.bf16.msra.mxu0 0
  %253 = vmatprep.subr.bf16.mxu0 0
  %254 = vmatpush2.bf16.msra.mxu0 0
  %255 = vmatprep.subr.bf16.mxu0 0
  %256 = vmatpush2.bf16.msra.mxu0 0
  %257 = vmatprep.mubr.bf16.mxu0 0
  %258 = vmatmul.mubr.bf16.gmra.mxu0 %v222
  %v259 = vpop.f32.mrf.mxu0
  %v260 = vadd.f32 %v224, %v259
  %v261 = vpop.f32.mrf.mxu0
  %v262 = vpop.f32.mrf.mxu0
  %v263 = vpop.f32.mrf.mxu0
  %264 = vdwg.mxu0
  %v265 = vtanh.pop %v260
  %s266 = scalar_lea.vmem %s3, 24
  %267 = vst [vmem:[%s266] sm:$0xff] %v265
  %v268 = vpack.c.bf16 %v265, %v265
  %s269 = scalar_lea.vmem %s0, 32
  %v270 = vld [vmem:[%s269] sm:$0xff]
  %271 = vmatprep.subr.bf16.mxu0 0
  %272 = vmatpush1.bf16.msra.mxu0 %v79
  %273 = vmatprep.subr.bf16.mxu0 0
  %274 = vmatpush1.bf16.msra.mxu0 %v78
  %275 = vmatprep.subr.bf16.mxu0 0
  %276 = vmatpush1.bf16.msra.mxu0 %v77
  %277 = vmatprep.subr.bf16.mxu0 0
  %278 = vmatpush1.bf16.msra.mxu0 %v76
  %279 = vmatprep.subr.bf16.mxu0 0
  %280 = vmatpush1.bf16.msra.mxu0 %v75
  %281 = vmatprep.subr.bf16.mxu0 0
  %282 = vmatpush1.bf16.msra.mxu0 %v74
  %283 = vmatprep.subr.bf16.mxu0 0
  %284 = vmatpush1.bf16.msra.mxu0 %v73
  %285 = vmatprep.subr.bf16.mxu0 0
  %286 = vmatpush1.bf16.msra.mxu0 %v72
  %287 = vmatprep.subr.bf16.mxu0 0
  %288 = vmatpush2.bf16.msra.mxu0 0
  %289 = vmatprep.subr.bf16.mxu0 0
  %290 = vmatpush2.bf16.msra.mxu0 0
  %291 = vmatprep.subr.bf16.mxu0 0
  %292 = vmatpush2.bf16.msra.mxu0 0
  %293 = vmatprep.subr.bf16.mxu0 0
  %294 = vmatpush2.bf16.msra.mxu0 0
  %295 = vmatprep.subr.bf16.mxu0 0
  %296 = vmatpush2.bf16.msra.mxu0 0
  %297 = vmatprep.subr.bf16.mxu0 0
  %298 = vmatpush2.bf16.msra.mxu0 0
  %299 = vmatprep.subr.bf16.mxu0 0
  %300 = vmatpush2.bf16.msra.mxu0 0
  %301 = vmatprep.subr.bf16.mxu0 0
  %302 = vmatpush2.bf16.msra.mxu0 0
  %303 = vmatprep.mubr.bf16.mxu0 0
  %304 = vmatmul.mubr.bf16.gmra.mxu0 %v268
  %v305 = vpop.f32.mrf.mxu0
  %v306 = vadd.f32 %v270, %v305
  %v307 = vpop.f32.mrf.mxu0
  %v308 = vpop.f32.mrf.mxu0
  %v309 = vpop.f32.mrf.mxu0
  %310 = vdwg.mxu0
  %v311 = vtanh.pop %v306
  %s312 = scalar_lea.vmem %s3, 32
  %313 = vst [vmem:[%s312] sm:$0xff] %v311
  %v314 = vpack.c.bf16 %v311, %v311
  %s315 = scalar_lea.vmem %s0, 40
  %v316 = vld [vmem:[%s315] sm:$0xff]
  %317 = vmatprep.subr.bf16.mxu0 0
  %318 = vmatpush1.bf16.msra.mxu0 %v79
  %319 = vmatprep.subr.bf16.mxu0 0
  %320 = vmatpush1.bf16.msra.mxu0 %v78
  %321 = vmatprep.subr.bf16.mxu0 0
  %322 = vmatpush1.bf16.msra.mxu0 %v77
  %323 = vmatprep.subr.bf16.mxu0 0
  %324 = vmatpush1.bf16.msra.mxu0 %v76
  %325 = vmatprep.subr.bf16.mxu0 0
  %326 = vmatpush1.bf16.msra.mxu0 %v75
  %327 = vmatprep.subr.bf16.mxu0 0
  %328 = vmatpush1.bf16.msra.mxu0 %v74
  %329 = vmatprep.subr.bf16.mxu0 0
  %330 = vmatpush1.bf16.msra.mxu0 %v73
  %331 = vmatprep.subr.bf16.mxu0 0
  %332 = vmatpush1.bf16.msra.mxu0 %v72
  %333 = vmatprep.subr.bf16.mxu0 0
  %334 = vmatpush2.bf16.msra.mxu0 0
  %335 = vmatprep.subr.bf16.mxu0 0
  %336 = vmatpush2.bf16.msra.mxu0 0
  %337 = vmatprep.subr.bf16.mxu0 0
  %338 = vmatpush2.bf16.msra.mxu0 0
  %339 = vmatprep.subr.bf16.mxu0 0
  %340 = vmatpush2.bf16.msra.mxu0 0
  %341 = vmatprep.subr.bf16.mxu0 0
  %342 = vmatpush2.bf16.msra.mxu0 0
  %343 = vmatprep.subr.bf16.mxu0 0
  %344 = vmatpush2.bf16.msra.mxu0 0
  %345 = vmatprep.subr.bf16.mxu0 0
  %346 = vmatpush2.bf16.msra.mxu0 0
  %347 = vmatprep.subr.bf16.mxu0 0
  %348 = vmatpush2.bf16.msra.mxu0 0
  %349 = vmatprep.mubr.bf16.mxu0 0
  %350 = vmatmul.mubr.bf16.gmra.mxu0 %v314
  %v351 = vpop.f32.mrf.mxu0
  %v352 = vadd.f32 %v316, %v351
  %v353 = vpop.f32.mrf.mxu0
  %v354 = vpop.f32.mrf.mxu0
  %v355 = vpop.f32.mrf.mxu0
  %356 = vdwg.mxu0
  %v357 = vtanh.pop %v352
  %s358 = scalar_lea.vmem %s3, 40
  %359 = vst [vmem:[%s358] sm:$0xff] %v357
  %v360 = vpack.c.bf16 %v357, %v357
  %s361 = scalar_lea.vmem %s0, 48
  %v362 = vld [vmem:[%s361] sm:$0xff]
  %363 = vmatprep.subr.bf16.mxu0 0
  %364 = vmatpush1.bf16.msra.mxu0 %v79
  %365 = vmatprep.subr.bf16.mxu0 0
  %366 = vmatpush1.bf16.msra.mxu0 %v78
  %367 = vmatprep.subr.bf16.mxu0 0
  %368 = vmatpush1.bf16.msra.mxu0 %v77
  %369 = vmatprep.subr.bf16.mxu0 0
  %370 = vmatpush1.bf16.msra.mxu0 %v76
  %371 = vmatprep.subr.bf16.mxu0 0
  %372 = vmatpush1.bf16.msra.mxu0 %v75
  %373 = vmatprep.subr.bf16.mxu0 0
  %374 = vmatpush1.bf16.msra.mxu0 %v74
  %375 = vmatprep.subr.bf16.mxu0 0
  %376 = vmatpush1.bf16.msra.mxu0 %v73
  %377 = vmatprep.subr.bf16.mxu0 0
  %378 = vmatpush1.bf16.msra.mxu0 %v72
  %379 = vmatprep.subr.bf16.mxu0 0
  %380 = vmatpush2.bf16.msra.mxu0 0
  %381 = vmatprep.subr.bf16.mxu0 0
  %382 = vmatpush2.bf16.msra.mxu0 0
  %383 = vmatprep.subr.bf16.mxu0 0
  %384 = vmatpush2.bf16.msra.mxu0 0
  %385 = vmatprep.subr.bf16.mxu0 0
  %386 = vmatpush2.bf16.msra.mxu0 0
  %387 = vmatprep.subr.bf16.mxu0 0
  %388 = vmatpush2.bf16.msra.mxu0 0
  %389 = vmatprep.subr.bf16.mxu0 0
  %390 = vmatpush2.bf16.msra.mxu0 0
  %391 = vmatprep.subr.bf16.mxu0 0
  %392 = vmatpush2.bf16.msra.mxu0 0
  %393 = vmatprep.subr.bf16.mxu0 0
  %394 = vmatpush2.bf16.msra.mxu0 0
  %395 = vmatprep.mubr.bf16.mxu0 0
  %396 = vmatmul.mubr.bf16.gmra.mxu0 %v360
  %v397 = vpop.f32.mrf.mxu0
  %v398 = vadd.f32 %v362, %v397
  %v399 = vpop.f32.mrf.mxu0
  %v400 = vpop.f32.mrf.mxu0
  %v401 = vpop.f32.mrf.mxu0
  %402 = vdwg.mxu0
  %v403 = vtanh.pop %v398
  %s404 = scalar_lea.vmem %s3, 48
  %405 = vst [vmem:[%s404] sm:$0xff] %v403
  %v406 = vpack.c.bf16 %v403, %v403
  %s407 = scalar_lea.vmem %s0, 56
  %v408 = vld [vmem:[%s407] sm:$0xff]
  %409 = vmatprep.subr.bf16.mxu0 0
  %410 = vmatpush1.bf16.msra.mxu0 %v79
  %411 = vmatprep.subr.bf16.mxu0 0
  %412 = vmatpush1.bf16.msra.mxu0 %v78
  %413 = vmatprep.subr.bf16.mxu0 0
  %414 = vmatpush1.bf16.msra.mxu0 %v77
  %415 = vmatprep.subr.bf16.mxu0 0
  %416 = vmatpush1.bf16.msra.mxu0 %v76
  %417 = vmatprep.subr.bf16.mxu0 0
  %418 = vmatpush1.bf16.msra.mxu0 %v75
  %419 = vmatprep.subr.bf16.mxu0 0
  %420 = vmatpush1.bf16.msra.mxu0 %v74
  %421 = vmatprep.subr.bf16.mxu0 0
  %422 = vmatpush1.bf16.msra.mxu0 %v73
  %423 = vmatprep.subr.bf16.mxu0 0
  %424 = vmatpush1.bf16.msra.mxu0 %v72
  %425 = vmatprep.subr.bf16.mxu0 0
  %426 = vmatpush2.bf16.msra.mxu0 0
  %427 = vmatprep.subr.bf16.mxu0 0
  %428 = vmatpush2.bf16.msra.mxu0 0
  %429 = vmatprep.subr.bf16.mxu0 0
  %430 = vmatpush2.bf16.msra.mxu0 0
  %431 = vmatprep.subr.bf16.mxu0 0
  %432 = vmatpush2.bf16.msra.mxu0 0
  %433 = vmatprep.subr.bf16.mxu0 0
  %434 = vmatpush2.bf16.msra.mxu0 0
  %435 = vmatprep.subr.bf16.mxu0 0
  %436 = vmatpush2.bf16.msra.mxu0 0
  %437 = vmatprep.subr.bf16.mxu0 0
  %438 = vmatpush2.bf16.msra.mxu0 0
  %439 = vmatprep.subr.bf16.mxu0 0
  %440 = vmatpush2.bf16.msra.mxu0 0
  %441 = vmatprep.mubr.bf16.mxu0 0
  %442 = vmatmul.mubr.bf16.gmra.mxu0 %v406
  %v443 = vpop.f32.mrf.mxu0
  %v444 = vadd.f32 %v408, %v443
  %v445 = vpop.f32.mrf.mxu0
  %v446 = vpop.f32.mrf.mxu0
  %v447 = vpop.f32.mrf.mxu0
  %448 = vdwg.mxu0
  %v449 = vtanh.pop %v444
  %s450 = scalar_lea.vmem %s3, 56
  %451 = vst [vmem:[%s450] sm:$0xff] %v449
  %452 = vst [vmem:[#allocation2] sm:$0xff] %v449
  // Predicated region
  $region18: #{recurrent_nn_sequence.1} parent=0 // pred_check
    _
  $region19: #{recurrent_nn_sequence.1} parent=0 // pred_check_branch
    %454 = sbr.rel (0) target = $region21
  $region20: #{recurrent_nn_sequence.1} parent=0 // pred_region
    _
  $region21: #{recurrent_nn_sequence.1} parent=0 // pred_fallthru
    _
  // Predicated region
  $region22: #{recurrent_nn_sequence.1} parent=0 // pred_check
    _
  $region23: #{recurrent_nn_sequence.1} parent=0 // pred_check_branch
    %456 = sbr.rel (0) target = $region25
  $region24: #{recurrent_nn_sequence.1} parent=0 // pred_region
    _
  $region25: #{recurrent_nn_sequence.1} parent=0 // pred_fallthru
    _

</llo_original>
